<compile_context>
chip_gen: v6e
topology: v6e:2x2x1
jax: 0.10.0
libtpu: 0.0.40
codegen_flags: <defaults>
</compile_context>

<pallas_src>
import functools

import jax
import jax.numpy as jnp
from jax.experimental import pallas as pl
from jax.experimental.pallas import tpu as pltpu

BN_EPS = 1e-5


def _round_up(x, m):
    return (x + m - 1) // m * m


# ----------------------------------------------------------------------------
# Pallas kernel: out = [relu]( X @ W + bias [+ residual] )
#   X: (TM, Kp) bf16, W: (Kp, TN) bf16, bias: (1, TN) f32, residual: (TM, TN) f32
# ----------------------------------------------------------------------------
def _mm_bias_kernel(*refs, relu, has_residual):
    if has_residual:
        x_ref, w_ref, b_ref, r_ref, o_ref = refs
    else:
        x_ref, w_ref, b_ref, o_ref = refs
        r_ref = None
    acc = jnp.dot(x_ref[...], w_ref[...], preferred_element_type=jnp.float32)
    acc = acc + b_ref[...]
    if r_ref is not None:
        acc = acc + r_ref[...]
    if relu:
        acc = jnp.maximum(acc, 0.0)
    o_ref[...] = acc.astype(o_ref.dtype)


def pallas_matmul_bias(x, packed, residual=None, relu=False):
    """x: (M, K) float; packed: pre-padded bf16 weight (Kp,Np) + f32 bias (1,Np)."""
    wp, bp = packed["w"], packed["b"]
    K, N = packed["K"], packed["N"]
    Kp, Np = wp.shape
    M = x.shape[0]

    TM = min(256, _round_up(max(M, 1), 8))
    Mp = _round_up(M, TM)
    TN = min(256, Np)

    if M == Mp and K == Kp:
        xp = x.astype(jnp.bfloat16)
    else:
        xp = jnp.zeros((Mp, Kp), jnp.bfloat16).at[:M, :K].set(
            x.astype(jnp.bfloat16))

    inputs = [xp, wp, bp]
    in_specs = [
        pl.BlockSpec((TM, Kp), lambda i, j: (i, 0)),
        pl.BlockSpec((Kp, TN), lambda i, j: (0, j)),
        pl.BlockSpec((1, TN), lambda i, j: (0, j)),
    ]
    has_residual = residual is not None
    if has_residual:
        residual = residual.astype(jnp.float32)
        if residual.shape == (Mp, Np):
            rp = residual
        else:
            rp = jnp.zeros((Mp, Np), jnp.float32).at[:M, :N].set(residual)
        inputs.append(rp)
        in_specs.append(pl.BlockSpec((TM, TN), lambda i, j: (i, j)))

    kernel = functools.partial(_mm_bias_kernel, relu=relu,
                               has_residual=has_residual)
    out = pl.pallas_call(
        kernel,
        out_shape=jax.ShapeDtypeStruct((Mp, Np), jnp.float32),
        grid=(Mp // TM, Np // TN),
        in_specs=in_specs,
        out_specs=pl.BlockSpec((TM, TN), lambda i, j: (i, j)),
        compiler_params=pltpu.CompilerParams(
            dimension_semantics=("parallel", "parallel"),
            vmem_limit_bytes=48 << 20,
        ),
    )(*inputs)
    if (Mp, Np) == (M, N):
        return out
    return out[:M, :N]


# ----------------------------------------------------------------------------
# Conv / pool glue (NHWC activations; im2col in bf16, matmul in Pallas)
# ----------------------------------------------------------------------------
def _im2col_nhwc(x, kh, kw, stride, pad, pad_value=0.0):
    n, h, w, c = x.shape
    xp = jnp.pad(x, ((0, 0), (pad, pad), (pad, pad), (0, 0)),
                 constant_values=pad_value)
    oh = (h + 2 * pad - kh) // stride + 1
    ow = (w + 2 * pad - kw) // stride + 1
    cols = []
    for i in range(kh):
        for j in range(kw):
            cols.append(xp[:, i:i + stride * (oh - 1) + 1:stride,
                           j:j + stride * (ow - 1) + 1:stride, :])
    patches = jnp.stack(cols, axis=3)                 # (N, OH, OW, kh*kw, C)
    patches = patches.astype(jnp.bfloat16)
    return patches.reshape(n * oh * ow, kh * kw * c), (n, oh, ow)


def conv_bn_act(x, packed, stride, pad, relu, residual=None):
    kh, kw = packed["kh"], packed["kw"]
    patches, (n, oh, ow) = _im2col_nhwc(x, kh, kw, stride, pad)
    res_mat = None
    if residual is not None:
        res_mat = residual.reshape(n * oh * ow, packed["N"])
    out = pallas_matmul_bias(patches, packed, residual=res_mat, relu=relu)
    return out.reshape(n, oh, ow, packed["N"])


def maxpool2d(x, k=3, stride=2, pad=1):
    n, h, w, c = x.shape
    xp = jnp.pad(x, ((0, 0), (pad, pad), (pad, pad), (0, 0)),
                 constant_values=-jnp.inf)
    oh = (h + 2 * pad - k) // stride + 1
    ow = (w + 2 * pad - k) // stride + 1
    cols = [xp[:, i:i + stride * (oh - 1) + 1:stride,
               j:j + stride * (ow - 1) + 1:stride, :]
            for i in range(k) for j in range(k)]
    return jnp.max(jnp.stack(cols, axis=0), axis=0)


def basic_block(x, p, stride):
    identity = x
    out = conv_bn_act(x, p["conv1"], stride, 1, relu=True)
    if "down_conv" in p:
        identity = conv_bn_act(x, p["down_conv"], stride, 0, relu=False)
    # conv2 -> bn2 -> (+identity) -> relu, fused into one Pallas call
    out = conv_bn_act(out, p["conv2"], 1, 1, relu=True, residual=identity)
    return out


# ----------------------------------------------------------------------------
# Parameter packing (done ONCE, outside the forward path):
#   BN scale folded into bf16 weights, weight/bias padded to (Kp, Np)/(1, Np)
# ----------------------------------------------------------------------------
def _pack_matmul(wmat, bias, extra=None):
    K, N = wmat.shape
    Kp, Np = _round_up(K, 128), _round_up(N, 128)
    wp = jnp.zeros((Kp, Np), jnp.bfloat16).at[:K, :N].set(
        wmat.astype(jnp.bfloat16))
    bp = jnp.zeros((1, Np), jnp.float32).at[0, :N].set(
        bias.astype(jnp.float32))
    packed = {"w": wp, "b": bp, "K": K, "N": N}
    if extra:
        packed.update(extra)
    return packed


def _pack_conv_bn(conv_w, bn):
    cout, cin, kh, kw = conv_w.shape
    scale = bn["gamma"] / jnp.sqrt(bn["var"] + BN_EPS)
    bias = bn["beta"] - bn["mean"] * scale
    # (cout,cin,kh,kw) -> (kh,kw,cin,cout) -> (kh*kw*cin, cout); fold BN scale.
    wmat = conv_w.transpose(2, 3, 1, 0).reshape(kh * kw * cin, cout)
    wmat = wmat * scale[None, :]
    return _pack_matmul(wmat, bias, extra={"kh": kh, "kw": kw})


def pack_params(raw):
    def pack_block(blk):
        pb = {"conv1": _pack_conv_bn(blk["conv1"], blk["bn1"]),
              "conv2": _pack_conv_bn(blk["conv2"], blk["bn2"])}
        if "down_conv" in blk:
            pb["down_conv"] = _pack_conv_bn(blk["down_conv"], blk["down_bn"])
        return pb

    packed = {"conv1": _pack_conv_bn(raw["conv1"], raw["bn1"])}
    for name in ("layer1", "layer2", "layer3", "layer4"):
        packed[name] = [pack_block(b) for b in raw[name]]
    p = raw["proj"]
    packed["proj1"] = _pack_matmul(p["w1"].T, p["b1"])
    packed["proj2"] = _pack_matmul(p["w2"].T, p["b2"])
    return packed


# ----------------------------------------------------------------------------
# Deterministic raw parameter init (shapes of torchvision resnet18 + MoCo head)
# ----------------------------------------------------------------------------
def _key_iter(seed):
    key = jax.random.PRNGKey(seed)
    while True:
        key, sub = jax.random.split(key)
        yield sub


def init_params(seed=0):
    keys = _key_iter(seed)

    def conv_init(cout, cin, k):
        fan_in = cin * k * k
        return (jax.random.normal(next(keys), (cout, cin, k, k), jnp.float32)
                * jnp.sqrt(2.0 / fan_in))

    def bn_init(c):
        return {
            "gamma": 1.0 + 0.01 * jax.random.normal(next(keys), (c,)),
            "beta": 0.01 * jax.random.normal(next(keys), (c,)),
            "mean": 0.01 * jax.random.normal(next(keys), (c,)),
            "var": 1.0 + 0.01 * jnp.abs(jax.random.normal(next(keys), (c,))),
        }

    def linear_init(cout, cin):
        bound = 1.0 / jnp.sqrt(cin)
        w = jax.random.uniform(next(keys), (cout, cin), jnp.float32,
                               -bound, bound)
        b = jax.random.uniform(next(keys), (cout,), jnp.float32, -bound, bound)
        return w, b

    def make_block(cin, cout, stride):
        blk = {
            "conv1": conv_init(cout, cin, 3), "bn1": bn_init(cout),
            "conv2": conv_init(cout, cout, 3), "bn2": bn_init(cout),
        }
        if stride != 1 or cin != cout:
            blk["down_conv"] = conv_init(cout, cin, 1)
            blk["down_bn"] = bn_init(cout)
        return blk

    params = {
        "conv1": conv_init(64, 3, 7), "bn1": bn_init(64),
        "layer1": [make_block(64, 64, 1), make_block(64, 64, 1)],
        "layer2": [make_block(64, 128, 2), make_block(128, 128, 1)],
        "layer3": [make_block(128, 256, 2), make_block(256, 256, 1)],
        "layer4": [make_block(256, 512, 2), make_block(512, 512, 1)],
    }
    w1, b1 = linear_init(512, 512)
    w2, b2 = linear_init(128, 512)
    params["proj"] = {"w1": w1, "b1": b1, "w2": w2, "b2": b2}
    return params


# ----------------------------------------------------------------------------
# MoCo.forward:  query = projection_head(backbone(x).flatten(1))
# ----------------------------------------------------------------------------
def moco_forward(params, x_nchw):
    x = jnp.transpose(x_nchw, (0, 2, 3, 1))          # NCHW -> NHWC (once)
    out = conv_bn_act(x, params["conv1"], stride=2, pad=3, relu=True)
    out = maxpool2d(out, k=3, stride=2, pad=1)
    for name, stride in (("layer1", 1), ("layer2", 2),
                         ("layer3", 2), ("layer4", 2)):
        blocks = params[name]
        out = basic_block(out, blocks[0], stride)
        out = basic_block(out, blocks[1], 1)
    # AdaptiveAvgPool2d((1,1)) + flatten(start_dim=1) -> (N, 512)
    feat = jnp.mean(out, axis=(1, 2))

    # MoCoProjectionHead(512, 512, 128): Linear -> ReLU -> Linear
    h = pallas_matmul_bias(feat, params["proj1"], relu=True)
    q = pallas_matmul_bias(h, params["proj2"], relu=False)
    return q


if __name__ == "__main__":
    raw = init_params(seed=0)
    params = pack_params(raw)
    x = jax.random.normal(jax.random.PRNGKey(0), (2, 3, 16, 16), jnp.float32)
    query = moco_forward(params, x)
    query = jax.block_until_ready(query)
    assert query.shape == (2, 128), query.shape
    assert bool(jnp.all(jnp.isfinite(query)))
    print("KERNEL_OK")
</pallas_src>

<mosaic_0001>
module attributes {stable_mosaic.version = 11 : i64} {
  func.func @_mm_bias_kernel(%arg0: i32, %arg1: i32, %arg2: memref<128x256xbf16, #tpu.memory_space<vmem>>, %arg3: memref<256x128xbf16, #tpu.memory_space<vmem>>, %arg4: memref<1x128xf32, #tpu.memory_space<vmem>>, %arg5: memref<128x128xf32, #tpu.memory_space<vmem>>) attributes {dimension_semantics = [#tpu.dimension_semantics<parallel>, #tpu.dimension_semantics<parallel>], iteration_bounds = array<i64: 1, 1>, scalar_prefetch = 0 : i64, scratch_operands = 0 : i64, tpu.core_type = #tpu.core_type<tc>, window_params = [{transform_indices = @transform_0, window_bounds = array<i64: 128, 256>}, {transform_indices = @transform_1, window_bounds = array<i64: 256, 128>}, {transform_indices = @transform_2, window_bounds = array<i64: 1, 128>}, {transform_indices = @transform_3, window_bounds = array<i64: 128, 128>}]} {
    %c0 = arith.constant 0 : index
    %c0_0 = arith.constant 0 : index
    %0 = vector.load %arg2[%c0, %c0_0] : memref<128x256xbf16, #tpu.memory_space<vmem>>, vector<128x256xbf16>
    %c0_1 = arith.constant 0 : index
    %c0_2 = arith.constant 0 : index
    %1 = vector.load %arg3[%c0_1, %c0_2] : memref<256x128xbf16, #tpu.memory_space<vmem>>, vector<256x128xbf16>
    %cst = arith.constant dense<0.000000e+00> : vector<128x128xf32>
    %2 = tpu.matmul %0, %1, %cst {dimension_numbers = #tpu.dot_dimension_numbers<[1], [0], [0], [1], [0, 0, 1, 1], [], []>} : vector<128x256xbf16>, vector<256x128xbf16>, vector<128x128xf32> -> vector<128x128xf32>
    %c0_3 = arith.constant 0 : index
    %c0_4 = arith.constant 0 : index
    %3 = vector.load %arg4[%c0_3, %c0_4] : memref<1x128xf32, #tpu.memory_space<vmem>>, vector<1x128xf32>
    %4 = vector.broadcast %3 : vector<1x128xf32> to vector<128x128xf32>
    %5 = arith.addf %2, %4 : vector<128x128xf32>
    %cst_5 = arith.constant 0.000000e+00 : f32
    %6 = vector.broadcast %cst_5 : f32 to vector<128x128xf32>
    %7 = arith.maximumf %5, %6 : vector<128x128xf32>
    %c0_6 = arith.constant 0 : index
    %c0_7 = arith.constant 0 : index
    %8 = vector.load %arg5[%c0_6, %c0_7] : memref<128x128xf32, #tpu.memory_space<vmem>>, vector<128x128xf32>
    tpu.vector_store %arg5[%c0_6, %c0_7], %7 {strides = array<i32>} : memref<128x128xf32, #tpu.memory_space<vmem>>, vector<128x128xf32>,
    return
  }
  func.func @transform_0(%arg0: i32, %arg1: i32) -> (i32, i32) {
    %c0_i32 = arith.constant 0 : i32
    %c0_i32_0 = arith.constant 0 : i32
    return %arg0, %c0_i32 : i32, i32
  }
  func.func @transform_1(%arg0: i32, %arg1: i32) -> (i32, i32) {
    %c0_i32 = arith.constant 0 : i32
    %c0_i32_0 = arith.constant 0 : i32
    return %c0_i32, %arg1 : i32, i32
  }
  func.func @transform_2(%arg0: i32, %arg1: i32) -> (i32, i32) {
    %c0_i32 = arith.constant 0 : i32
    %c0_i32_0 = arith.constant 0 : i32
    return %c0_i32, %arg1 : i32, i32
  }
  func.func @transform_3(%arg0: i32, %arg1: i32) -> (i32, i32) {
    %c0_i32 = arith.constant 0 : i32
    return %arg0, %arg1 : i32, i32
  }
}

</mosaic_0001>

<llo_original>
// kernel: tpu_custom_call.1
$region0: #{tpu_custom_call.1}
  #allocation0 [shape = 'u32[]', space=smem, size = 0x4, offset = 0x4, fixed_abs, tag = 'smem constant byte address 0x4 - core index']
  #allocation1 [shape = 'u32[144,128]{1,0:T(1,128)}', space=vmem, size = 0x12000, scoped, tag = 'internal scratch']
  %s0 = inlined_call_operand.hbm [shape: bf16[128,256], index: 0, kind: input, shape index: {}]
  %s1 = inlined_call_operand.hbm [shape: bf16[256,128], index: 1, kind: input, shape index: {}]
  %s2 = inlined_call_operand.vmem [shape: f32[1,128], index: 2, kind: input, shape index: {}]
  %s3 = inlined_call_operand.hbm [shape: f32[128,128], index: 3, kind: output, shape index: {}]
  %s4 = sld [smem:[#allocation0]]
  $region30: #{tpu_custom_call.1} parent=0
    _
  %s6 = ssub.s32 1, %s4
  %s7 = scalar_select 0, %s6, %s4
  $region1: #{tpu_custom_call.1} parent=0
    #allocation2 [shape = 'u8[65536]{0}', space=vmem, size = 0x10000, scoped, tag = 'input window, operand 0, single buffered']
    #allocation3 [shape = 's32[1]{0}', space=sflag, size = 0x4, scoped, tag = 'scoped memory for tpu_custom_call.1']
    #allocation4 [shape = 's32[1]{0}', space=sflag, size = 0x4, scoped, tag = 'scoped memory for tpu_custom_call.1']
    #allocation5 [shape = 'u8[65536]{0}', space=vmem, size = 0x10000, scoped, tag = 'input window, operand 1, single buffered']
    #allocation6 [shape = 's32[1]{0}', space=sflag, size = 0x4, scoped, tag = 'scoped memory for tpu_custom_call.1']
    #allocation7 [shape = 'u8[65536]{0}', space=vmem, size = 0x10000, scoped, tag = 'output window, operand 0, single buffered']
    %8 = vsyncpa [#allocation3], 0
    %9 = vsyncpa [#allocation6], 0
    %10 = vsyncpa [#allocation4], 0
    // Predicated region
    $region2: #{tpu_custom_call.1} parent=1 // pred_check
      _
    $region3: #{tpu_custom_call.1} parent=1 // pred_check_branch
      %12 = sbr.rel (0) target = $region5
    $region4: #{tpu_custom_call.1} parent=1 // pred_region
      %s14 = ssub.s32 2048, 2048
      %15 = vsyncadd [#allocation3], %s14
      %s16 = sshll.u32 [#allocation2], 4
      %s17 = int_to_ptr.vmem [resolvable:$true] %s16
      %22 = dma.hbm_to_vmem [thread:$0]  %s0, 2048, %s17, [#allocation3], 128, 128, 8
    $region5: #{tpu_custom_call.1} parent=1 // pred_fallthru
      _
    // Predicated region
    $region6: #{tpu_custom_call.1} parent=1 // pred_check
      _
    $region7: #{tpu_custom_call.1} parent=1 // pred_check_branch
      %24 = sbr.rel (0) target = $region9
    $region8: #{tpu_custom_call.1} parent=1 // pred_region
      %s26 = ssub.s32 2048, 2048
      %27 = vsyncadd [#allocation6], %s26
      %s28 = sshll.u32 [#allocation5], 4
      %s29 = int_to_ptr.vmem [resolvable:$true] %s28
      %34 = dma.hbm_to_vmem [thread:$0]  %s1, 2048, %s29, [#allocation6], 64, 64, 4
    $region9: #{tpu_custom_call.1} parent=1 // pred_fallthru
      _
    // Predicated region
    $region10: #{tpu_custom_call.1} parent=1 // pred_check
      _
    $region11: #{tpu_custom_call.1} parent=1 // pred_check_branch
      %36 = sbr.rel (0) target = $region13
    $region12: #{tpu_custom_call.1} parent=1 // pred_region
      _
    $region13: #{tpu_custom_call.1} parent=1 // pred_fallthru
      _
    // Predicated region
    $region14: #{tpu_custom_call.1} parent=1 // pred_check
      _
    $region15: #{tpu_custom_call.1} parent=1 // pred_check_branch
      %38 = sbr.rel (0) target = $region17
    $region16: #{tpu_custom_call.1} parent=1 // pred_region
      %39 = dma.done [#allocation3], 2048
    $region17: #{tpu_custom_call.1} parent=1 // pred_fallthru
      _
    // Predicated region
    $region18: #{tpu_custom_call.1} parent=1 // pred_check
      _
    $region19: #{tpu_custom_call.1} parent=1 // pred_check_branch
      %41 = sbr.rel (0) target = $region21
    $region20: #{tpu_custom_call.1} parent=1 // pred_region
      %42 = dma.done [#allocation6], 2048
    $region21: #{tpu_custom_call.1} parent=1 // pred_fallthru
      _
    %v44 = vld [vmem:[#allocation2] sm:$0xff]
    %v45 = vld [vmem:[#allocation2 + $0x8] sm:$0xff]
    %v46 = vld [vmem:[#allocation2 + $0x10] sm:$0xff]
    %v47 = vld [vmem:[#allocation2 + $0x18] sm:$0xff]
    %v48 = vld [vmem:[#allocation2 + $0x20] sm:$0xff]
    %v49 = vld [vmem:[#allocation2 + $0x28] sm:$0xff]
    %v50 = vld [vmem:[#allocation2 + $0x30] sm:$0xff]
    %v51 = vld [vmem:[#allocation2 + $0x38] sm:$0xff]
    %v52 = vld [vmem:[#allocation2 + $0x40] sm:$0xff]
    %v53 = vld [vmem:[#allocation2 + $0x48] sm:$0xff]
    %v54 = vld [vmem:[#allocation2 + $0x50] sm:$0xff]
    %v55 = vld [vmem:[#allocation2 + $0x58] sm:$0xff]
    %v56 = vld [vmem:[#allocation2 + $0x60] sm:$0xff]
    %v57 = vld [vmem:[#allocation2 + $0x68] sm:$0xff]
    %v58 = vld [vmem:[#allocation2 + $0x70] sm:$0xff]
    %v59 = vld [vmem:[#allocation2 + $0x78] sm:$0xff]
    %v60 = vld [vmem:[#allocation5] sm:$0xf]
    %v61 = vld [vmem:[#allocation5 + $0x4] sm:$0xf]
    %v62 = vld [vmem:[#allocation5 + $0x8] sm:$0xf]
    %v63 = vld [vmem:[#allocation5 + $0xc] sm:$0xf]
    %v64 = vld [vmem:[#allocation5 + $0x10] sm:$0xf]
    %v65 = vld [vmem:[#allocation5 + $0x14] sm:$0xf]
    %v66 = vld [vmem:[#allocation5 + $0x18] sm:$0xf]
    %v67 = vld [vmem:[#allocation5 + $0x1c] sm:$0xf]
    %v68 = vld [vmem:[#allocation5 + $0x20] sm:$0xf]
    %v69 = vld [vmem:[#allocation5 + $0x24] sm:$0xf]
    %v70 = vld [vmem:[#allocation5 + $0x28] sm:$0xf]
    %v71 = vld [vmem:[#allocation5 + $0x2c] sm:$0xf]
    %v72 = vld [vmem:[#allocation5 + $0x30] sm:$0xf]
    %v73 = vld [vmem:[#allocation5 + $0x34] sm:$0xf]
    %v74 = vld [vmem:[#allocation5 + $0x38] sm:$0xf]
    %v75 = vld [vmem:[#allocation5 + $0x3c] sm:$0xf]
    %v76 = vld [vmem:[#allocation5 + $0x40] sm:$0xf]
    %v77 = vld [vmem:[#allocation5 + $0x44] sm:$0xf]
    %v78 = vld [vmem:[#allocation5 + $0x48] sm:$0xf]
    %v79 = vld [vmem:[#allocation5 + $0x4c] sm:$0xf]
    %v80 = vld [vmem:[#allocation5 + $0x50] sm:$0xf]
    %v81 = vld [vmem:[#allocation5 + $0x54] sm:$0xf]
    %v82 = vld [vmem:[#allocation5 + $0x58] sm:$0xf]
    %v83 = vld [vmem:[#allocation5 + $0x5c] sm:$0xf]
    %v84 = vld [vmem:[#allocation5 + $0x60] sm:$0xf]
    %v85 = vld [vmem:[#allocation5 + $0x64] sm:$0xf]
    %v86 = vld [vmem:[#allocation5 + $0x68] sm:$0xf]
    %v87 = vld [vmem:[#allocation5 + $0x6c] sm:$0xf]
    %v88 = vld [vmem:[#allocation5 + $0x70] sm:$0xf]
    %v89 = vld [vmem:[#allocation5 + $0x74] sm:$0xf]
    %v90 = vld [vmem:[#allocation5 + $0x78] sm:$0xf]
    %v91 = vld [vmem:[#allocation5 + $0x7c] sm:$0xf]
    %v92 = vld [vmem:[%s2] sm:$0x1]
    %v94 = vlaneseq
    %v95 = vshrl.u32 %v94, 7
    %v96 = vsub.s32 0, %v95
    %v97 = vrot.slane %v92, %v96
    %v115 = vunpack.c.l.b16 %v44
    %v116 = vunpack.c.h.b16 %v44
    %v117 = vunpack.c.l.b16 %v45
    %v118 = vunpack.c.h.b16 %v45
    %v119 = vunpack.c.l.b16 %v46
    %v120 = vunpack.c.h.b16 %v46
    %v121 = vunpack.c.l.b16 %v47
    %v122 = vunpack.c.h.b16 %v47
    %v123 = vunpack.c.l.b16 %v48
    %v124 = vunpack.c.h.b16 %v48
    %v125 = vunpack.c.l.b16 %v49
    %v126 = vunpack.c.h.b16 %v49
    %v127 = vunpack.c.l.b16 %v50
    %v128 = vunpack.c.h.b16 %v50
    %v129 = vunpack.c.l.b16 %v51
    %v130 = vunpack.c.h.b16 %v51
    %v131 = vunpack.c.l.b16 %v52
    %v132 = vunpack.c.h.b16 %v52
    %v133 = vunpack.c.l.b16 %v53
    %v134 = vunpack.c.h.b16 %v53
    %v135 = vunpack.c.l.b16 %v54
    %v136 = vunpack.c.h.b16 %v54
    %v137 = vunpack.c.l.b16 %v55
    %v138 = vunpack.c.h.b16 %v55
    %v139 = vunpack.c.l.b16 %v56
    %v140 = vunpack.c.h.b16 %v56
    %v141 = vunpack.c.l.b16 %v57
    %v142 = vunpack.c.h.b16 %v57
    %v143 = vunpack.c.l.b16 %v58
    %v144 = vunpack.c.h.b16 %v58
    %v145 = vunpack.c.l.b16 %v59
    %v146 = vunpack.c.h.b16 %v59
    %v147 = vpack.c.b16 %v117, %v115
    %v148 = vpack.c.b16 %v118, %v116
    %v149 = vpack.c.b16 %v121, %v119
    %v150 = vpack.c.b16 %v122, %v120
    %v151 = vpack.c.b16 %v125, %v123
    %v152 = vpack.c.b16 %v126, %v124
    %v153 = vpack.c.b16 %v129, %v127
    %v154 = vpack.c.b16 %v130, %v128
    %v155 = vpack.c.b16 %v133, %v131
    %v156 = vpack.c.b16 %v134, %v132
    %v157 = vpack.c.b16 %v137, %v135
    %v158 = vpack.c.b16 %v138, %v136
    %v159 = vpack.c.b16 %v141, %v139
    %v160 = vpack.c.b16 %v142, %v140
    %v161 = vpack.c.b16 %v145, %v143
    %v162 = vpack.c.b16 %v146, %v144
    %v211 = vunpack.c.l.b16 %v60
    %v212 = vunpack.c.l.b16 %v61
    %v213 = vunpack.c.l.b16 %v62
    %v214 = vunpack.c.l.b16 %v63
    %v215 = vunpack.c.l.b16 %v64
    %v216 = vunpack.c.l.b16 %v65
    %v217 = vunpack.c.l.b16 %v66
    %v218 = vunpack.c.l.b16 %v67
    %v219 = vunpack.c.l.b16 %v68
    %v220 = vunpack.c.l.b16 %v69
    %v221 = vunpack.c.l.b16 %v70
    %v222 = vunpack.c.l.b16 %v71
    %v223 = vunpack.c.l.b16 %v72
    %v224 = vunpack.c.l.b16 %v73
    %v225 = vunpack.c.l.b16 %v74
    %v226 = vunpack.c.l.b16 %v75
    %v227 = vunpack.c.l.b16 %v76
    %v228 = vunpack.c.l.b16 %v77
    %v229 = vunpack.c.l.b16 %v78
    %v230 = vunpack.c.l.b16 %v79
    %v231 = vunpack.c.l.b16 %v80
    %v232 = vunpack.c.l.b16 %v81
    %v233 = vunpack.c.l.b16 %v82
    %v234 = vunpack.c.l.b16 %v83
    %v235 = vunpack.c.l.b16 %v84
    %v236 = vunpack.c.l.b16 %v85
    %v237 = vunpack.c.l.b16 %v86
    %v238 = vunpack.c.l.b16 %v87
    %v239 = vunpack.c.l.b16 %v88
    %v240 = vunpack.c.l.b16 %v89
    %v241 = vunpack.c.l.b16 %v90
    %v242 = vunpack.c.l.b16 %v91
    %v243 = vpack.c.b16 %v212, %v211
    %v244 = vpack.c.b16 %v214, %v213
    %v245 = vpack.c.b16 %v216, %v215
    %v246 = vpack.c.b16 %v218, %v217
    %v247 = vpack.c.b16 %v220, %v219
    %v248 = vpack.c.b16 %v222, %v221
    %v249 = vpack.c.b16 %v224, %v223
    %v250 = vpack.c.b16 %v226, %v225
    %v251 = vpack.c.b16 %v228, %v227
    %v252 = vpack.c.b16 %v230, %v229
    %v253 = vpack.c.b16 %v232, %v231
    %v254 = vpack.c.b16 %v234, %v233
    %v255 = vpack.c.b16 %v236, %v235
    %v256 = vpack.c.b16 %v238, %v237
    %v257 = vpack.c.b16 %v240, %v239
    %v258 = vpack.c.b16 %v242, %v241
    %275 = vmatprep.subr.bf16.mxu0 0
    %276 = vmatpush1.bf16.msra.mxu0 %v250
    %277 = vmatprep.subr.bf16.mxu0 0
    %278 = vmatpush1.bf16.msra.mxu0 %v249
    %279 = vmatprep.subr.bf16.mxu0 0
    %280 = vmatpush1.bf16.msra.mxu0 %v248
    %281 = vmatprep.subr.bf16.mxu0 0
    %282 = vmatpush1.bf16.msra.mxu0 %v247
    %283 = vmatprep.subr.bf16.mxu0 0
    %284 = vmatpush1.bf16.msra.mxu0 %v246
    %285 = vmatprep.subr.bf16.mxu0 0
    %286 = vmatpush1.bf16.msra.mxu0 %v245
    %287 = vmatprep.subr.bf16.mxu0 0
    %288 = vmatpush1.bf16.msra.mxu0 %v244
    %289 = vmatprep.subr.bf16.mxu0 0
    %290 = vmatpush1.bf16.msra.mxu0 %v243
    %291 = vmatprep.subr.bf16.mxu0 0
    %292 = vmatpush2.bf16.msra.mxu0 %v258
    %293 = vmatprep.subr.bf16.mxu0 0
    %294 = vmatpush2.bf16.msra.mxu0 %v257
    %295 = vmatprep.subr.bf16.mxu0 0
    %296 = vmatpush2.bf16.msra.mxu0 %v256
    %297 = vmatprep.subr.bf16.mxu0 0
    %298 = vmatpush2.bf16.msra.mxu0 %v255
    %299 = vmatprep.subr.bf16.mxu0 0
    %300 = vmatpush2.bf16.msra.mxu0 %v254
    %301 = vmatprep.subr.bf16.mxu0 0
    %302 = vmatpush2.bf16.msra.mxu0 %v253
    %303 = vmatprep.subr.bf16.mxu0 0
    %304 = vmatpush2.bf16.msra.mxu0 %v252
    %305 = vmatprep.subr.bf16.mxu0 0
    %306 = vmatpush2.bf16.msra.mxu0 %v251
    %307 = vmatprep.mubr.bf16.mxu0 %v148
    %308 = vmatmul.mubr.bf16.gmra.mxu0 %v147
    %v309 = vpop.f32.mrf.mxu0
    %v310 = vadd.f32 %v97, %v309
    %v311 = vpop.f32.mrf.mxu0
    %v312 = vpop.f32.mrf.mxu0
    %v313 = vadd.f32 %v97, %v312
    %v314 = vpop.f32.mrf.mxu0
    %315 = vmatprep.mubr.bf16.mxu0 %v150
    %316 = vmatmul.mubr.bf16.gmra.mxu0 %v149
    %v317 = vpop.f32.mrf.mxu0
    %v318 = vadd.f32 %v97, %v317
    %v319 = vpop.f32.mrf.mxu0
    %v320 = vpop.f32.mrf.mxu0
    %v321 = vadd.f32 %v97, %v320
    %v322 = vpop.f32.mrf.mxu0
    %323 = vmatprep.mubr.bf16.mxu0 %v152
    %324 = vmatmul.mubr.bf16.gmra.mxu0 %v151
    %v325 = vpop.f32.mrf.mxu0
    %v326 = vadd.f32 %v97, %v325
    %v327 = vpop.f32.mrf.mxu0
    %v328 = vpop.f32.mrf.mxu0
    %v329 = vadd.f32 %v97, %v328
    %v330 = vpop.f32.mrf.mxu0
    %331 = vmatprep.mubr.bf16.mxu0 %v154
    %332 = vmatmul.mubr.bf16.gmra.mxu0 %v153
    %v333 = vpop.f32.mrf.mxu0
    %v334 = vadd.f32 %v97, %v333
    %v335 = vpop.f32.mrf.mxu0
    %v336 = vpop.f32.mrf.mxu0
    %v337 = vadd.f32 %v97, %v336
    %v338 = vpop.f32.mrf.mxu0
    %339 = vmatprep.mubr.bf16.mxu0 %v156
    %340 = vmatmul.mubr.bf16.gmra.mxu0 %v155
    %v341 = vpop.f32.mrf.mxu0
    %v342 = vadd.f32 %v97, %v341
    %v343 = vpop.f32.mrf.mxu0
    %v344 = vpop.f32.mrf.mxu0
    %v345 = vadd.f32 %v97, %v344
    %v346 = vpop.f32.mrf.mxu0
    %347 = vmatprep.mubr.bf16.mxu0 %v158
    %348 = vmatmul.mubr.bf16.gmra.mxu0 %v157
    %v349 = vpop.f32.mrf.mxu0
    %v350 = vadd.f32 %v97, %v349
    %v351 = vpop.f32.mrf.mxu0
    %v352 = vpop.f32.mrf.mxu0
    %v353 = vadd.f32 %v97, %v352
    %v354 = vpop.f32.mrf.mxu0
    %355 = vmatprep.mubr.bf16.mxu0 %v160
    %356 = vmatmul.mubr.bf16.gmra.mxu0 %v159
    %v357 = vpop.f32.mrf.mxu0
    %v358 = vadd.f32 %v97, %v357
    %v359 = vpop.f32.mrf.mxu0
    %v360 = vpop.f32.mrf.mxu0
    %v361 = vadd.f32 %v97, %v360
    %v362 = vpop.f32.mrf.mxu0
    %363 = vmatprep.mubr.bf16.mxu0 %v162
    %364 = vmatmul.mubr.bf16.gmra.mxu0 %v161
    %v365 = vpop.f32.mrf.mxu0
    %v366 = vadd.f32 %v97, %v365
    %v367 = vpop.f32.mrf.mxu0
    %v368 = vpop.f32.mrf.mxu0
    %v369 = vadd.f32 %v97, %v368
    %v370 = vpop.f32.mrf.mxu0
    %371 = vdwg.mxu0
    %v372 = vmax.f32 %v310, 0.0
    %v373 = vmax.f32 %v313, 0.0
    %v374 = vmax.f32 %v318, 0.0
    %v375 = vmax.f32 %v321, 0.0
    %v376 = vmax.f32 %v326, 0.0
    %v377 = vmax.f32 %v329, 0.0
    %v378 = vmax.f32 %v334, 0.0
    %v379 = vmax.f32 %v337, 0.0
    %v380 = vmax.f32 %v342, 0.0
    %v381 = vmax.f32 %v345, 0.0
    %v382 = vmax.f32 %v350, 0.0
    %v383 = vmax.f32 %v353, 0.0
    %v384 = vmax.f32 %v358, 0.0
    %v385 = vmax.f32 %v361, 0.0
    %v386 = vmax.f32 %v366, 0.0
    %v387 = vmax.f32 %v369, 0.0
    %388 = vst [vmem:[#allocation7] sm:$0xff] %v372
    %389 = vst [vmem:[#allocation7 + $0x8] sm:$0xff] %v373
    %390 = vst [vmem:[#allocation7 + $0x10] sm:$0xff] %v374
    %391 = vst [vmem:[#allocation7 + $0x18] sm:$0xff] %v375
    %392 = vst [vmem:[#allocation7 + $0x20] sm:$0xff] %v376
    %393 = vst [vmem:[#allocation7 + $0x28] sm:$0xff] %v377
    %394 = vst [vmem:[#allocation7 + $0x30] sm:$0xff] %v378
    %395 = vst [vmem:[#allocation7 + $0x38] sm:$0xff] %v379
    %396 = vst [vmem:[#allocation7 + $0x40] sm:$0xff] %v380
    %397 = vst [vmem:[#allocation7 + $0x48] sm:$0xff] %v381
    %398 = vst [vmem:[#allocation7 + $0x50] sm:$0xff] %v382
    %399 = vst [vmem:[#allocation7 + $0x58] sm:$0xff] %v383
    %400 = vst [vmem:[#allocation7 + $0x60] sm:$0xff] %v384
    %401 = vst [vmem:[#allocation7 + $0x68] sm:$0xff] %v385
    %402 = vst [vmem:[#allocation7 + $0x70] sm:$0xff] %v386
    %403 = vst [vmem:[#allocation7 + $0x78] sm:$0xff] %v387
    // Predicated region
    $region22: #{tpu_custom_call.1} parent=1 // pred_check
      _
    $region23: #{tpu_custom_call.1} parent=1 // pred_check_branch
      %405 = sbr.rel (0) target = $region25
    $region24: #{tpu_custom_call.1} parent=1 // pred_region
      %s407 = ssub.s32 2048, 2048
      %408 = vsyncadd [#allocation4], %s407
      %s409 = sshll.u32 [#allocation7], 4
      %s410 = int_to_ptr.vmem [resolvable:$true] %s409
      %415 = dma.vmem_to_hbm [thread:$0]  %s410, 2048, %s3, [#allocation4], 128, 128, 8
    $region25: #{tpu_custom_call.1} parent=1 // pred_fallthru
      _
    // Predicated region
    $region26: #{tpu_custom_call.1} parent=1 // pred_check
      _
    $region27: #{tpu_custom_call.1} parent=1 // pred_check_branch
      %417 = sbr.rel (0) target = $region29
    $region28: #{tpu_custom_call.1} parent=1 // pred_region
      %418 = dma.done [#allocation4], 2048
    $region29: #{tpu_custom_call.1} parent=1 // pred_fallthru
      _
    %419 = vsyncpa [#allocation3], 1
    %420 = vsyncpa [#allocation6], 1
    %421 = vsyncpa [#allocation4], 1

</llo_original>
